<compile_context>
chip_gen: v5e
topology: v5e:2x2
jax: 0.10.0
libtpu: 0.0.40
codegen_flags: <defaults>
</compile_context>

<pallas_src>
import jax
import jax.numpy as jnp
from jax.experimental import pallas as pl
from jax.experimental.pallas import tpu as pltpu


def cfnet_mlp_kernel(xt_ref, w1_ref, b1_ref, w2_ref, b2_ref, o_ref):
    # Shapes (feature-major):
    #   xt_ref : (2E, block_b)  -- cat([U, V], dim=1)^T batch tile
    #   w1_ref : (H, 2E)        -- lin1 weight, resident
    #   b1_ref : (H, 1)
    #   w2_ref : (H, 1)         -- lin2 weight as a column
    #   b2_ref : (1, 1)
    #   o_ref  : (1, block_b)   -- lane-dense scores row

    # relu(cat([U, V], dim=1)) -- elementwise, layout independent.
    x = jnp.maximum(xt_ref[...], 0.0)

    # dropout(p=0.1): identity (inference semantics).
    # TODO(synk): training-mode dropout would use pltpu.prng_seed + pltpu.stateful_bernoulli.

    # relu(lin1(x)) in transposed form: one MXU matmul with K = 2E.
    h = jnp.dot(w1_ref[...], x, preferred_element_type=jnp.float32)   # (H, block_b)
    h = jnp.maximum(h + b1_ref[...], 0.0)

    # lin2(h): N=1 matmul replaced by VPU multiply + sublane (XLU) reduction,
    # which yields the lane-dense (1, block_b) output row directly.
    o_ref[...] = jnp.sum(h * w2_ref[...], axis=0, keepdims=True) + b2_ref[...]


def cfnet_forward(u_idx, v_idx, params, *, block_b=512):
    user_emb = params["user_emb"]
    item_emb = params["item_emb"]
    w1, b1 = params["w1"], params["b1"]   # w1: (H, 2E), b1: (H,)
    w2, b2 = params["w2"], params["b2"]   # w2: (1, H),  b2: (1,)

    E = user_emb.shape[1]
    H = w1.shape[0]
    B = u_idx.shape[0]

    # Embedding lookups (XLA glue), emitted directly in the feature-major layout.
    # TODO(synk): fuse the gather into the kernel (scalar-prefetched indices with
    # VMEM-resident tables or a manual DMA gather) to remove the extra HBM round
    # trip for U/V; kept in the wrapper because in-kernel dynamic-gather lowering
    # is shape-restricted and real CF tables may not fit v7x's 64 MiB VMEM.
    U = jnp.take(user_emb, u_idx, axis=0)                             # (B, E)
    V = jnp.take(item_emb, v_idx, axis=0)                             # (B, E)
    x_t = jnp.concatenate([U, V], axis=1).T.astype(jnp.float32)       # (2E, B)

    # Batch tile on lanes: multiple of 128; pad ragged batches with zeros.
    block_b = max(128, (min(block_b, pl.cdiv(B, 128) * 128) // 128) * 128)
    Bp = pl.cdiv(B, block_b) * block_b
    if Bp != B:
        x_t = jnp.pad(x_t, ((0, 0), (0, Bp - B)))

    w1f = jnp.asarray(w1, jnp.float32)                                # (H, 2E)
    b1c = jnp.asarray(b1.reshape(H, 1), jnp.float32)                  # (H, 1)
    w2c = jnp.asarray(w2.reshape(H, 1), jnp.float32)                  # (H, 1)
    b2c = jnp.asarray(b2.reshape(1, 1), jnp.float32)                  # (1, 1)

    cost = pl.CostEstimate(
        flops=int(2 * Bp * (2 * E * H + H)),
        transcendentals=0,
        bytes_accessed=int(4 * (x_t.size + Bp + w1f.size + 2 * H + 1)),
    )

    out_t = pl.pallas_call(
        cfnet_mlp_kernel,
        out_shape=jax.ShapeDtypeStruct((1, Bp), jnp.float32),
        grid_spec=pltpu.PrefetchScalarGridSpec(
            num_scalar_prefetch=0,
            grid=(Bp // block_b,),
            in_specs=[
                pl.BlockSpec((2 * E, block_b), lambda i: (0, i)),     # x^T batch tile
                pl.BlockSpec((H, 2 * E), lambda i: (0, 0)),           # W1 (resident)
                pl.BlockSpec((H, 1), lambda i: (0, 0)),               # b1
                pl.BlockSpec((H, 1), lambda i: (0, 0)),               # W2 column
                pl.BlockSpec((1, 1), lambda i: (0, 0)),               # b2
            ],
            out_specs=pl.BlockSpec((1, block_b), lambda i: (0, i)),   # lane-dense row
        ),
        compiler_params=pltpu.CompilerParams(
            dimension_semantics=("parallel",),
        ),
        cost_estimate=cost,
    )(x_t, w1f, b1c, w2c, b2c)

    return out_t[:, :B].T                                             # (B, 1)


def cfnet_reference(u_idx, v_idx, params):
    """Pure-JAX reference mirroring the PyTorch forward (eval mode)."""
    U = jnp.take(params["user_emb"], u_idx, axis=0)
    V = jnp.take(params["item_emb"], v_idx, axis=0)
    x = jax.nn.relu(jnp.concatenate([U, V], axis=1))
    x = jax.nn.relu(x @ params["w1"].T + params["b1"])
    return x @ params["w2"].T + params["b2"]


def init_params(key, n_users, n_items, emb_size, n_hidden):
    ks = jax.random.split(key, 6)
    return {
        "user_emb": jax.random.normal(ks[0], (n_users, emb_size), jnp.float32) * 0.1,
        "item_emb": jax.random.normal(ks[1], (n_items, emb_size), jnp.float32) * 0.1,
        "w1": jax.random.normal(ks[2], (n_hidden, emb_size * 2), jnp.float32) * 0.1,
        "b1": jax.random.normal(ks[3], (n_hidden,), jnp.float32) * 0.1,
        "w2": jax.random.normal(ks[4], (1, n_hidden), jnp.float32) * 0.1,
        "b2": jax.random.normal(ks[5], (1,), jnp.float32) * 0.1,
    }


if __name__ == "__main__":
    n_users, n_items = 200, 150
    emb_size, n_hidden = 32, 16
    batch = 2048          # 4 grid steps at block_b=512 -> multi-step parallel grid

    key = jax.random.PRNGKey(0)
    kp, ku, kv = jax.random.split(key, 3)
    params = init_params(kp, n_users, n_items, emb_size, n_hidden)

    u_idx = jax.random.randint(ku, (batch,), 0, n_users, dtype=jnp.int32)
    v_idx = jax.random.randint(kv, (batch,), 0, n_items, dtype=jnp.int32)

    out = cfnet_forward(u_idx, v_idx, params, block_b=512)
    out = jax.block_until_ready(out)

    ref = cfnet_reference(u_idx, v_idx, params)
    assert out.shape == (batch, 1)
    assert jnp.allclose(out, ref, atol=1e-5, rtol=1e-5), "mismatch vs reference"

    print("KERNEL_OK")
</pallas_src>

<mosaic_0001>
module attributes {stable_mosaic.version = 11 : i64} {
  func.func @cfnet_mlp_kernel(%arg0: i32, %arg1: memref<64x512xf32, #tpu.memory_space<vmem>>, %arg2: memref<16x64xf32, #tpu.memory_space<vmem>>, %arg3: memref<16x1xf32, #tpu.memory_space<vmem>>, %arg4: memref<16x1xf32, #tpu.memory_space<vmem>>, %arg5: memref<1x1xf32, #tpu.memory_space<vmem>>, %arg6: memref<1x512xf32, #tpu.memory_space<vmem>>) attributes {dimension_semantics = [#tpu.dimension_semantics<parallel>], iteration_bounds = array<i64: 4>, scalar_prefetch = 0 : i64, scratch_operands = 0 : i64, tpu.core_type = #tpu.core_type<tc>, window_params = [{transform_indices = @transform_0, window_bounds = array<i64: 64, 512>}, {pipeline_mode = #tpu.pipeline_mode<synchronous>, transform_indices = @transform_1, window_bounds = array<i64: 16, 64>}, {pipeline_mode = #tpu.pipeline_mode<synchronous>, transform_indices = @transform_2, window_bounds = array<i64: 16, 1>}, {pipeline_mode = #tpu.pipeline_mode<synchronous>, transform_indices = @transform_3, window_bounds = array<i64: 16, 1>}, {pipeline_mode = #tpu.pipeline_mode<synchronous>, transform_indices = @transform_4, window_bounds = array<i64: 1, 1>}, {transform_indices = @transform_5, window_bounds = array<i64: 1, 512>}]} {
    %c0 = arith.constant 0 : index
    %c0_0 = arith.constant 0 : index
    %0 = vector.load %arg1[%c0, %c0_0] : memref<64x512xf32, #tpu.memory_space<vmem>>, vector<64x512xf32>
    %cst = arith.constant 0.000000e+00 : f32
    %1 = vector.broadcast %cst : f32 to vector<64x512xf32>
    %2 = arith.maximumf %0, %1 : vector<64x512xf32>
    %c0_1 = arith.constant 0 : index
    %c0_2 = arith.constant 0 : index
    %3 = vector.load %arg2[%c0_1, %c0_2] : memref<16x64xf32, #tpu.memory_space<vmem>>, vector<16x64xf32>
    %cst_3 = arith.constant dense<0.000000e+00> : vector<16x512xf32>
    %4 = tpu.matmul %3, %2, %cst_3 {dimension_numbers = #tpu.dot_dimension_numbers<[1], [0], [0], [1], [0, 0, 1, 1], [], []>} : vector<16x64xf32>, vector<64x512xf32>, vector<16x512xf32> -> vector<16x512xf32>
    %c0_4 = arith.constant 0 : index
    %c0_5 = arith.constant 0 : index
    %5 = vector.load %arg3[%c0_4, %c0_5] : memref<16x1xf32, #tpu.memory_space<vmem>>, vector<16x1xf32>
    %6 = vector.broadcast %5 : vector<16x1xf32> to vector<16x512xf32>
    %7 = arith.addf %4, %6 : vector<16x512xf32>
    %cst_6 = arith.constant 0.000000e+00 : f32
    %8 = vector.broadcast %cst_6 : f32 to vector<16x512xf32>
    %9 = arith.maximumf %7, %8 : vector<16x512xf32>
    %c0_7 = arith.constant 0 : index
    %c0_8 = arith.constant 0 : index
    %10 = vector.load %arg4[%c0_7, %c0_8] : memref<16x1xf32, #tpu.memory_space<vmem>>, vector<16x1xf32>
    %11 = vector.broadcast %10 : vector<16x1xf32> to vector<16x512xf32>
    %12 = arith.mulf %9, %11 : vector<16x512xf32>
    %cst_9 = arith.constant dense<0.000000e+00> : vector<512xf32>
    %13 = vector.multi_reduction <add>, %12, %cst_9 [0] : vector<16x512xf32> to vector<512xf32>
    %14 = vector.shape_cast %13 : vector<512xf32> to vector<1x512xf32>
    %c0_10 = arith.constant 0 : index
    %c0_11 = arith.constant 0 : index
    %15 = vector.load %arg5[%c0_10, %c0_11] : memref<1x1xf32, #tpu.memory_space<vmem>>, vector<1x1xf32>
    %16 = vector.broadcast %15 : vector<1x1xf32> to vector<1x512xf32>
    %17 = arith.addf %14, %16 : vector<1x512xf32>
    %c0_12 = arith.constant 0 : index
    %c0_13 = arith.constant 0 : index
    %18 = vector.load %arg6[%c0_12, %c0_13] : memref<1x512xf32, #tpu.memory_space<vmem>>, vector<1x512xf32>
    tpu.vector_store %arg6[%c0_12, %c0_13], %17 {strides = array<i32>} : memref<1x512xf32, #tpu.memory_space<vmem>>, vector<1x512xf32>,
    return
  }
  func.func @transform_0(%arg0: i32) -> (i32, i32) {
    %c0_i32 = arith.constant 0 : i32
    %c0_i32_0 = arith.constant 0 : i32
    return %c0_i32, %arg0 : i32, i32
  }
  func.func @transform_1(%arg0: i32) -> (i32, i32) {
    %c0_i32 = arith.constant 0 : i32
    %c0_i32_0 = arith.constant 0 : i32
    %c0_i32_1 = arith.constant 0 : i32
    return %c0_i32, %c0_i32_0 : i32, i32
  }
  func.func @transform_2(%arg0: i32) -> (i32, i32) {
    %c0_i32 = arith.constant 0 : i32
    %c0_i32_0 = arith.constant 0 : i32
    %c0_i32_1 = arith.constant 0 : i32
    return %c0_i32, %c0_i32_0 : i32, i32
  }
  func.func @transform_3(%arg0: i32) -> (i32, i32) {
    %c0_i32 = arith.constant 0 : i32
    %c0_i32_0 = arith.constant 0 : i32
    %c0_i32_1 = arith.constant 0 : i32
    return %c0_i32, %c0_i32_0 : i32, i32
  }
  func.func @transform_4(%arg0: i32) -> (i32, i32) {
    %c0_i32 = arith.constant 0 : i32
    %c0_i32_0 = arith.constant 0 : i32
    %c0_i32_1 = arith.constant 0 : i32
    return %c0_i32, %c0_i32_0 : i32, i32
  }
  func.func @transform_5(%arg0: i32) -> (i32, i32) {
    %c0_i32 = arith.constant 0 : i32
    %c0_i32_0 = arith.constant 0 : i32
    return %c0_i32, %arg0 : i32, i32
  }
}

</mosaic_0001>

<llo_original>
// kernel: tpu_custom_call.1
$region0: #{tpu_custom_call.1}
  #allocation0 [shape = 'u32[]', space=smem, size = 0x4, offset = 0x4, fixed_abs, tag = 'smem constant byte address 0x4 - core index']
  #allocation1 [shape = 'u32[72,128]{1,0:T(1,128)}', space=vmem, size = 0x9000, scoped, tag = 'internal scratch']
  #allocation2 [shape = 'f32[1,1]{1,0:T(1,128)S(1)}', space=vmem, size = 0x200, scoped, tag = 'scoped memory for tpu_custom_call.1']
  %s0 = inlined_call_operand.hbm [shape: f32[64,2048], index: 0, kind: input, shape index: {}]
  %s1 = inlined_call_operand.vmem [shape: f32[16,64], index: 1, kind: input, shape index: {}]
  %s2 = inlined_call_operand.vmem [shape: f32[16,1], index: 2, kind: input, shape index: {}]
  %s3 = inlined_call_operand.vmem [shape: f32[16,1], index: 3, kind: input, shape index: {}]
  %s4 = inlined_call_operand.<no memory space> [shape: f32[1,1], index: 4, kind: input, shape index: {}]
  %s5 = inlined_call_operand.hbm [shape: f32[1,2048], index: 5, kind: output, shape index: {}]
  %s6 = sld [smem:[#allocation0]]
  $region57: #{tpu_custom_call.1} parent=0
    _
  %s8 = ssub.s32 1, %s6
  %s9 = scalar_select 0, %s8, %s6
  %v10 = vstv %s4
  %11 = vst [vmem:[#allocation2] sm:$0x1] %v10
  $region1: #{tpu_custom_call.1} parent=0
    #allocation3 [shape = 'u8[262144]{0}', space=vmem, size = 0x40000, scoped, tag = 'input window, operand 0']
    #allocation4 [shape = 's32[2]{0}', space=sflag, size = 0x8, scoped, tag = 'scoped memory for tpu_custom_call.1']
    #allocation5 [shape = 's32[2]{0}', space=sflag, size = 0x8, scoped, tag = 'scoped memory for tpu_custom_call.1']
    #allocation6 [shape = 'u8[4096]{0}', space=vmem, size = 0x1000, scoped, tag = 'output window, operand 0']
    %12 = vsyncpa [#allocation4], 0
    %s13 = scalar_lea.sflag [#allocation4], 1
    %14 = vsyncpa %s13, 0
    %15 = vsyncpa [#allocation5], 0
    %s16 = scalar_lea.sflag [#allocation5], 1
    %17 = vsyncpa %s16, 0
    loop: start=0, step=1, limit=6
    $region2: #{tpu_custom_call.1} parent=1 // loop_pre_header
      _
    $region3: #{tpu_custom_call.1} parent=1 // loop_header
      %s19 = sphi 0, %s23
      %p20 = scmp.ge.s32.totalorder %s19, 6
      %s29 = sphi 0, %s31
      %s32 = sphi 0, %s29
      %s33 = sphi 0, %s32
      %s49 = sphi 0, %s33
      %s53 = sphi 0, %s53
      %s55 = sphi 0, %s53
      %s56 = sphi 0, %s55
      %s70 = sphi 0, %s56
      %s74 = sphi 0, %s74
      %s76 = sphi 0, %s74
      %s77 = sphi 0, %s76
      %s91 = sphi 0, %s77
      %s95 = sphi 0, %s95
      %s97 = sphi 0, %s95
      %s98 = sphi 0, %s97
      %s112 = sphi 0, %s98
      %s116 = sphi 0, %s116
      %s118 = sphi 0, %s116
      %s119 = sphi 0, %s118
      %s133 = sphi 0, %s119
      %s139 = sphi 0, %s141
      %s142 = sphi 0, %s139
      %s143 = sphi 0, %s142
      %s159 = sphi 0, %s143
    $region4: #{tpu_custom_call.1} parent=1 // loop_header_branch
      %22 = sbr.rel (%p20) target = $region8
    $region5: #{tpu_custom_call.1} parent=1 // loop_body
      %s24 = ssub.s32 %s19, 1
      %s25 = ssub.s32 %s19, 2
      %s26 = sadd.s32 %s19, 1
      %s27 = ssub.s32 %s19, %s26
      %p28 = scmp.eq.s32.totalorder %s27, 0
      %s30 = sadd.s32 %s29, 1
      %s31 = scalar_select %p28, %s29, %s30
      %p34 = pneg %p28
      %p35 = scmp.eq.s32.totalorder %s19, 3
      %p36 = por %p34, %p35
      %p37 = scmp.ne.s32.totalorder %s29, %s32
      %p38 = scmp.eq.s32.totalorder %s19, 0
      %p39 = por %p37, %p38
      %p40 = scmp.ne.s32.totalorder %s29, %s32
      %p41 = scmp.eq.s32.totalorder %s24, 3
      %p42 = por %p40, %p41
      %p43 = scmp.ne.s32.totalorder %s32, %s33
      %p44 = scmp.eq.s32.totalorder %s24, 0
      %p45 = por %p43, %p44
      %p46 = scmp.ne.s32.totalorder %s32, %s33
      %p47 = scmp.eq.s32.totalorder %s25, 3
      %p48 = por %p46, %p47
      %p50 = scmp.ne.s32.totalorder %s33, %s49
      %p51 = scmp.eq.s32.totalorder %s25, 0
      %p52 = por %p50, %p51
      %s54 = sadd.s32 %s53, 1
      %p57 = scmp.eq.s32.totalorder %s19, 3
      %p58 = scmp.ne.s32.totalorder %s53, %s55
      %p59 = scmp.eq.s32.totalorder %s19, 0
      %p60 = por %p58, %p59
      %p61 = scmp.ne.s32.totalorder %s53, %s55
      %p62 = scmp.eq.s32.totalorder %s24, 3
      %p63 = por %p61, %p62
      %p64 = scmp.ne.s32.totalorder %s55, %s56
      %p65 = scmp.eq.s32.totalorder %s24, 0
      %p66 = por %p64, %p65
      %p67 = scmp.ne.s32.totalorder %s55, %s56
      %p68 = scmp.eq.s32.totalorder %s25, 3
      %p69 = por %p67, %p68
      %p71 = scmp.ne.s32.totalorder %s56, %s70
      %p72 = scmp.eq.s32.totalorder %s25, 0
      %p73 = por %p71, %p72
      %s75 = sadd.s32 %s74, 1
      %p78 = scmp.eq.s32.totalorder %s19, 3
      %p79 = scmp.ne.s32.totalorder %s74, %s76
      %p80 = scmp.eq.s32.totalorder %s19, 0
      %p81 = por %p79, %p80
      %p82 = scmp.ne.s32.totalorder %s74, %s76
      %p83 = scmp.eq.s32.totalorder %s24, 3
      %p84 = por %p82, %p83
      %p85 = scmp.ne.s32.totalorder %s76, %s77
      %p86 = scmp.eq.s32.totalorder %s24, 0
      %p87 = por %p85, %p86
      %p88 = scmp.ne.s32.totalorder %s76, %s77
      %p89 = scmp.eq.s32.totalorder %s25, 3
      %p90 = por %p88, %p89
      %p92 = scmp.ne.s32.totalorder %s77, %s91
      %p93 = scmp.eq.s32.totalorder %s25, 0
      %p94 = por %p92, %p93
      %s96 = sadd.s32 %s95, 1
      %p99 = scmp.eq.s32.totalorder %s19, 3
      %p100 = scmp.ne.s32.totalorder %s95, %s97
      %p101 = scmp.eq.s32.totalorder %s19, 0
      %p102 = por %p100, %p101
      %p103 = scmp.ne.s32.totalorder %s95, %s97
      %p104 = scmp.eq.s32.totalorder %s24, 3
      %p105 = por %p103, %p104
      %p106 = scmp.ne.s32.totalorder %s97, %s98
      %p107 = scmp.eq.s32.totalorder %s24, 0
      %p108 = por %p106, %p107
      %p109 = scmp.ne.s32.totalorder %s97, %s98
      %p110 = scmp.eq.s32.totalorder %s25, 3
      %p111 = por %p109, %p110
      %p113 = scmp.ne.s32.totalorder %s98, %s112
      %p114 = scmp.eq.s32.totalorder %s25, 0
      %p115 = por %p113, %p114
      %s117 = sadd.s32 %s116, 1
      %p120 = scmp.eq.s32.totalorder %s19, 3
      %p121 = scmp.ne.s32.totalorder %s116, %s118
      %p122 = scmp.eq.s32.totalorder %s19, 0
      %p123 = por %p121, %p122
      %p124 = scmp.ne.s32.totalorder %s116, %s118
      %p125 = scmp.eq.s32.totalorder %s24, 3
      %p126 = por %p124, %p125
      %p127 = scmp.ne.s32.totalorder %s118, %s119
      %p128 = scmp.eq.s32.totalorder %s24, 0
      %p129 = por %p127, %p128
      %p130 = scmp.ne.s32.totalorder %s118, %s119
      %p131 = scmp.eq.s32.totalorder %s25, 3
      %p132 = por %p130, %p131
      %p134 = scmp.ne.s32.totalorder %s119, %s133
      %p135 = scmp.eq.s32.totalorder %s25, 0
      %p136 = por %p134, %p135
      %s137 = ssub.s32 %s19, %s26
      %p138 = scmp.eq.s32.totalorder %s137, 0
      %s140 = sadd.s32 %s139, 1
      %s141 = scalar_select %p138, %s139, %s140
      %p144 = pneg %p138
      %p145 = scmp.eq.s32.totalorder %s19, 3
      %p146 = por %p144, %p145
      %p147 = scmp.ne.s32.totalorder %s139, %s142
      %p148 = scmp.eq.s32.totalorder %s19, 0
      %p149 = por %p147, %p148
      %p150 = scmp.ne.s32.totalorder %s139, %s142
      %p151 = scmp.eq.s32.totalorder %s24, 3
      %p152 = por %p150, %p151
      %p153 = scmp.ne.s32.totalorder %s142, %s143
      %p154 = scmp.eq.s32.totalorder %s24, 0
      %p155 = por %p153, %p154
      %p156 = scmp.ne.s32.totalorder %s142, %s143
      %p157 = scmp.eq.s32.totalorder %s25, 3
      %p158 = por %p156, %p157
      %p160 = scmp.ne.s32.totalorder %s143, %s159
      %p161 = scmp.eq.s32.totalorder %s25, 0
      %p162 = por %p160, %p161
      %p163 = scmp.le.s32.totalorder 1, %s19
      %p164 = scmp.lt.s32.totalorder %s19, 5
      %p165 = pnand %p163, %p164
      %p166 = pneg %p165
      // Predicated region
      $region9: #{tpu_custom_call.1} parent=5 // pred_check
        _
      $region10: #{tpu_custom_call.1} parent=5 // pred_check_branch
        %168 = sbr.rel (%p165) target = $region12
      $region11: #{tpu_custom_call.1} parent=5 // pred_region
        %s169 = ssub.s32 %s19, 1
        // Predicated region
        $region13: #{tpu_custom_call.1} parent=11 // pred_check
          %p170 = pneg %p66
        $region14: #{tpu_custom_call.1} parent=11 // pred_check_branch
          %172 = sbr.rel (%p170) target = $region16
        $region15: #{tpu_custom_call.1} parent=11 // pred_region
          _
        $region16: #{tpu_custom_call.1} parent=11 // pred_fallthru
          _
        // Predicated region
        $region17: #{tpu_custom_call.1} parent=11 // pred_check
          %p173 = pneg %p87
        $region18: #{tpu_custom_call.1} parent=11 // pred_check_branch
          %175 = sbr.rel (%p173) target = $region20
        $region19: #{tpu_custom_call.1} parent=11 // pred_region
          _
        $region20: #{tpu_custom_call.1} parent=11 // pred_fallthru
          _
        // Predicated region
        $region21: #{tpu_custom_call.1} parent=11 // pred_check
          %p176 = pneg %p108
        $region22: #{tpu_custom_call.1} parent=11 // pred_check_branch
          %178 = sbr.rel (%p176) target = $region24
        $region23: #{tpu_custom_call.1} parent=11 // pred_region
          _
        $region24: #{tpu_custom_call.1} parent=11 // pred_fallthru
          _
        // Predicated region
        $region25: #{tpu_custom_call.1} parent=11 // pred_check
          %p179 = pneg %p129
        $region26: #{tpu_custom_call.1} parent=11 // pred_check_branch
          %181 = sbr.rel (%p179) target = $region28
        $region27: #{tpu_custom_call.1} parent=11 // pred_region
          _
        $region28: #{tpu_custom_call.1} parent=11 // pred_fallthru
          _
      $region12: #{tpu_custom_call.1} parent=5 // pred_fallthru
        _
      %p182 = scmp.lt.s32.totalorder %s19, 4
      // Predicated region
      $region29: #{tpu_custom_call.1} parent=5 // pred_check
        %p183 = pneg %p182
      $region30: #{tpu_custom_call.1} parent=5 // pred_check_branch
        %185 = sbr.rel (%p183) target = $region32
      $region31: #{tpu_custom_call.1} parent=5 // pred_region
        // Predicated region
        $region33: #{tpu_custom_call.1} parent=31 // pred_check
          %p186 = pneg %p39
        $region34: #{tpu_custom_call.1} parent=31 // pred_check_branch
          %188 = sbr.rel (%p186) target = $region36
        $region35: #{tpu_custom_call.1} parent=31 // pred_region
          %s189 = sand.u32 %s29, 1
          %s190 = scalar_lea.sflag [#allocation4], %s189
          %s191 = sand.u32 %s29, 1
          %s192 = smul.addr %s191, 256
          %s193 = scalar_lea.vmem [#allocation3], %s192
          %s194 = smul.u32 4, %s19
          %196 = vsyncadd %s190, 0
          %s197 = smul.addr %s194, 8
          %s198 = scalar_lea.hbm %s0, %s197
          %s199 = sshll.u32 %s198, 4
          %s200 = int_to_ptr.hbm [resolvable:$true] %s199
          %s201 = sshll.u32 %s193, 4
          %s202 = int_to_ptr.vmem [resolvable:$true] %s201
          %207 = dma.hbm_to_vmem [thread:$0]  %s200, 4096, %s202, %s190, 2048, 512, 32
        $region36: #{tpu_custom_call.1} parent=31 // pred_fallthru
          _
      $region32: #{tpu_custom_call.1} parent=5 // pred_fallthru
        _
      %p208 = scmp.le.s32.totalorder 1, %s19
      %p209 = scmp.lt.s32.totalorder %s19, 5
      %p210 = pnand %p208, %p209
      %p211 = pneg %p210
      // Predicated region
      $region37: #{tpu_custom_call.1} parent=5 // pred_check
        _
      $region38: #{tpu_custom_call.1} parent=5 // pred_check_branch
        %213 = sbr.rel (%p210) target = $region40
      $region39: #{tpu_custom_call.1} parent=5 // pred_region
        %s214 = ssub.s32 %s19, 1
        %s215 = sand.u32 %s32, 1
        %s216 = scalar_lea.sflag [#allocation4], %s215
        %s217 = sand.u32 %s32, 1
        %s218 = smul.addr %s217, 256
        %s219 = scalar_lea.vmem [#allocation3], %s218
        // Predicated region
        $region41: #{tpu_custom_call.1} parent=39 // pred_check
          %p220 = pneg %p45
        $region42: #{tpu_custom_call.1} parent=39 // pred_check_branch
          %222 = sbr.rel (%p220) target = $region44
        $region43: #{tpu_custom_call.1} parent=39 // pred_region
          %224 = dma.done %s216, 4096
        $region44: #{tpu_custom_call.1} parent=39 // pred_fallthru
          _
        %s225 = sand.u32 %s32, 1
        %s226 = scalar_lea.sflag [#allocation4], %s225
        %s227 = sand.u32 %s32, 1
        %s228 = smul.addr %s227, 256
        %s229 = scalar_lea.vmem [#allocation3], %s228
        %p230 = pneg %p45
        %p231 = pneg %p42
        %p232 = pneg %p66
        %p233 = pneg %p63
        %p234 = pneg %p87
        %p235 = pneg %p84
        %p236 = pneg %p108
        %p237 = pneg %p105
        %p238 = pneg %p129
        %p239 = pneg %p126
        %p240 = pneg %p155
        %p241 = pneg %p152
        %s242 = sand.u32 %s142, 1
        %s243 = scalar_lea.sflag [#allocation5], %s242
        %s244 = sand.u32 %s142, 1
        %s245 = smul.addr %s244, 4
        %s246 = scalar_lea.vmem [#allocation6], %s245
        %s247 = smul.u32 4, %s24
        %s248 = smul.u32 4, %s24
        %v249 = vld [vmem:[%s219] sm:$0xff]
        %v250 = vld [vmem:[%s219 + $0x8] sm:$0xff]
        %v251 = vld [vmem:[%s219 + $0x10] sm:$0xff]
        %v252 = vld [vmem:[%s219 + $0x18] sm:$0xff]
        %v253 = vld [vmem:[%s219 + $0x20] sm:$0xff]
        %v254 = vld [vmem:[%s219 + $0x28] sm:$0xff]
        %v255 = vld [vmem:[%s219 + $0x30] sm:$0xff]
        %v256 = vld [vmem:[%s219 + $0x38] sm:$0xff]
        %v257 = vld [vmem:[%s219 + $0x40] sm:$0xff]
        %v258 = vld [vmem:[%s219 + $0x48] sm:$0xff]
        %v259 = vld [vmem:[%s219 + $0x50] sm:$0xff]
        %v260 = vld [vmem:[%s219 + $0x58] sm:$0xff]
        %v261 = vld [vmem:[%s219 + $0x60] sm:$0xff]
        %v262 = vld [vmem:[%s219 + $0x68] sm:$0xff]
        %v263 = vld [vmem:[%s219 + $0x70] sm:$0xff]
        %v264 = vld [vmem:[%s219 + $0x78] sm:$0xff]
        %v265 = vld [vmem:[%s219 + $0x80] sm:$0xff]
        %v266 = vld [vmem:[%s219 + $0x88] sm:$0xff]
        %v267 = vld [vmem:[%s219 + $0x90] sm:$0xff]
        %v268 = vld [vmem:[%s219 + $0x98] sm:$0xff]
        %v269 = vld [vmem:[%s219 + $0xa0] sm:$0xff]
        %v270 = vld [vmem:[%s219 + $0xa8] sm:$0xff]
        %v271 = vld [vmem:[%s219 + $0xb0] sm:$0xff]
        %v272 = vld [vmem:[%s219 + $0xb8] sm:$0xff]
        %v273 = vld [vmem:[%s219 + $0xc0] sm:$0xff]
        %v274 = vld [vmem:[%s219 + $0xc8] sm:$0xff]
        %v275 = vld [vmem:[%s219 + $0xd0] sm:$0xff]
        %v276 = vld [vmem:[%s219 + $0xd8] sm:$0xff]
        %v277 = vld [vmem:[%s219 + $0xe0] sm:$0xff]
        %v278 = vld [vmem:[%s219 + $0xe8] sm:$0xff]
        %v279 = vld [vmem:[%s219 + $0xf0] sm:$0xff]
        %v280 = vld [vmem:[%s219 + $0xf8] sm:$0xff]
        %v281 = vmax.f32 %v249, 0.0
        %v282 = vmax.f32 %v250, 0.0
        %v283 = vmax.f32 %v251, 0.0
        %v284 = vmax.f32 %v252, 0.0
        %v285 = vmax.f32 %v253, 0.0
        %v286 = vmax.f32 %v254, 0.0
        %v287 = vmax.f32 %v255, 0.0
        %v288 = vmax.f32 %v256, 0.0
        %v289 = vmax.f32 %v257, 0.0
        %v290 = vmax.f32 %v258, 0.0
        %v291 = vmax.f32 %v259, 0.0
        %v292 = vmax.f32 %v260, 0.0
        %v293 = vmax.f32 %v261, 0.0
        %v294 = vmax.f32 %v262, 0.0
        %v295 = vmax.f32 %v263, 0.0
        %v296 = vmax.f32 %v264, 0.0
        %v297 = vmax.f32 %v265, 0.0
        %v298 = vmax.f32 %v266, 0.0
        %v299 = vmax.f32 %v267, 0.0
        %v300 = vmax.f32 %v268, 0.0
        %v301 = vmax.f32 %v269, 0.0
        %v302 = vmax.f32 %v270, 0.0
        %v303 = vmax.f32 %v271, 0.0
        %v304 = vmax.f32 %v272, 0.0
        %v305 = vmax.f32 %v273, 0.0
        %v306 = vmax.f32 %v274, 0.0
        %v307 = vmax.f32 %v275, 0.0
        %v308 = vmax.f32 %v276, 0.0
        %v309 = vmax.f32 %v277, 0.0
        %v310 = vmax.f32 %v278, 0.0
        %v311 = vmax.f32 %v279, 0.0
        %v312 = vmax.f32 %v280, 0.0
        %v313 = vld [vmem:[%s1] sm:$0xff]
        %v314 = vld [vmem:[%s1 + $0x8] sm:$0xff]
        %v315 = vld [vmem:[%s2] sm:$0xff]
        %v316 = vld [vmem:[%s2 + $0x8] sm:$0xff]
        %318 = vset.pattern.permute.xlu0 0
        %319 = vperm.xlu0 %318, %v315
        %v320 = vpop.permute.xlu0 %319
        %323 = vset.pattern.permute.xlu0 0
        %324 = vperm.xlu0 %323, %v316
        %v325 = vpop.permute.xlu0 %324
        %vm327 = vcmask 523264
        %v329 = vsel %vm327, %v313, 0
        %v332 = vsel %vm327, %v314, 0
        %334 = vmatpush.msra.mxu0 0.0
        %335 = vmatpush.msra.mxu0 0.0
        %336 = vmatpush.msra.mxu0 0.0
        %337 = vmatpush.msra.mxu0 0.0
        %338 = vmatpush.msra.mxu0 0.0
        %339 = vmatpush.msra.mxu0 0.0
        %340 = vmatpush.msra.mxu0 0.0
        %341 = vmatpush.msra.mxu0 0.0
        %342 = vmatpush.msra.mxu0 %v309
        %343 = vmatpush.msra.mxu0 %v305
        %344 = vmatpush.msra.mxu0 %v301
        %345 = vmatpush.msra.mxu0 %v297
        %346 = vmatpush.msra.mxu0 %v293
        %347 = vmatpush.msra.mxu0 %v289
        %348 = vmatpush.msra.mxu0 %v285
        %349 = vmatpush.msra.mxu0 %v281
        %350 = vmatmul.f32.gmra.mxu0 %v329
        %v351 = vpop.f32.mrf.mxu0
        %v352 = vadd.f32 %v320, %v351
        %353 = vmatmul.f32.gmra.mxu0 %v332
        %v354 = vpop.f32.mrf.mxu0
        %v355 = vadd.f32 %v325, %v354
        %356 = vdwg.mxu0
        %357 = vmatpush.msra.mxu0 0.0
        %358 = vmatpush.msra.mxu0 0.0
        %359 = vmatpush.msra.mxu0 0.0
        %360 = vmatpush.msra.mxu0 0.0
        %361 = vmatpush.msra.mxu0 0.0
        %362 = vmatpush.msra.mxu0 0.0
        %363 = vmatpush.msra.mxu0 0.0
        %364 = vmatpush.msra.mxu0 0.0
        %365 = vmatpush.msra.mxu0 %v310
        %366 = vmatpush.msra.mxu0 %v306
        %367 = vmatpush.msra.mxu0 %v302
        %368 = vmatpush.msra.mxu0 %v298
        %369 = vmatpush.msra.mxu0 %v294
        %370 = vmatpush.msra.mxu0 %v290
        %371 = vmatpush.msra.mxu0 %v286
        %372 = vmatpush.msra.mxu0 %v282
        %373 = vmatmul.f32.gmra.mxu0 %v329
        %v374 = vpop.f32.mrf.mxu0
        %v375 = vadd.f32 %v320, %v374
        %376 = vmatmul.f32.gmra.mxu0 %v332
        %v377 = vpop.f32.mrf.mxu0
        %v378 = vadd.f32 %v325, %v377
        %379 = vdwg.mxu0
        %380 = vmatpush.msra.mxu0 0.0
        %381 = vmatpush.msra.mxu0 0.0
        %382 = vmatpush.msra.mxu0 0.0
        %383 = vmatpush.msra.mxu0 0.0
        %384 = vmatpush.msra.mxu0 0.0
        %385 = vmatpush.msra.mxu0 0.0
        %386 = vmatpush.msra.mxu0 0.0
        %387 = vmatpush.msra.mxu0 0.0
        %388 = vmatpush.msra.mxu0 %v311
        %389 = vmatpush.msra.mxu0 %v307
        %390 = vmatpush.msra.mxu0 %v303
        %391 = vmatpush.msra.mxu0 %v299
        %392 = vmatpush.msra.mxu0 %v295
        %393 = vmatpush.msra.mxu0 %v291
        %394 = vmatpush.msra.mxu0 %v287
        %395 = vmatpush.msra.mxu0 %v283
        %396 = vmatmul.f32.gmra.mxu0 %v329
        %v397 = vpop.f32.mrf.mxu0
        %v398 = vadd.f32 %v320, %v397
        %399 = vmatmul.f32.gmra.mxu0 %v332
        %v400 = vpop.f32.mrf.mxu0
        %v401 = vadd.f32 %v325, %v400
        %402 = vdwg.mxu0
        %403 = vmatpush.msra.mxu0 0.0
        %404 = vmatpush.msra.mxu0 0.0
        %405 = vmatpush.msra.mxu0 0.0
        %406 = vmatpush.msra.mxu0 0.0
        %407 = vmatpush.msra.mxu0 0.0
        %408 = vmatpush.msra.mxu0 0.0
        %409 = vmatpush.msra.mxu0 0.0
        %410 = vmatpush.msra.mxu0 0.0
        %411 = vmatpush.msra.mxu0 %v312
        %412 = vmatpush.msra.mxu0 %v308
        %413 = vmatpush.msra.mxu0 %v304
        %414 = vmatpush.msra.mxu0 %v300
        %415 = vmatpush.msra.mxu0 %v296
        %416 = vmatpush.msra.mxu0 %v292
        %417 = vmatpush.msra.mxu0 %v288
        %418 = vmatpush.msra.mxu0 %v284
        %419 = vmatmul.f32.gmra.mxu0 %v329
        %v420 = vpop.f32.mrf.mxu0
        %v421 = vadd.f32 %v320, %v420
        %422 = vmatmul.f32.gmra.mxu0 %v332
        %v423 = vpop.f32.mrf.mxu0
        %v424 = vadd.f32 %v325, %v423
        %425 = vdwg.mxu0
        %v426 = vmax.f32 %v352, 0.0
        %v427 = vmax.f32 %v375, 0.0
        %v428 = vmax.f32 %v398, 0.0
        %v429 = vmax.f32 %v421, 0.0
        %v430 = vmax.f32 %v355, 0.0
        %v431 = vmax.f32 %v378, 0.0
        %v432 = vmax.f32 %v401, 0.0
        %v433 = vmax.f32 %v424, 0.0
        %v434 = vld [vmem:[%s3] sm:$0xff]
        %v435 = vld [vmem:[%s3 + $0x8] sm:$0xff]
        %437 = vset.pattern.permute.xlu0 0
        %438 = vperm.xlu0 %437, %v434
        %v439 = vpop.permute.xlu0 %438
        %442 = vset.pattern.permute.xlu0 0
        %443 = vperm.xlu0 %442, %v435
        %v444 = vpop.permute.xlu0 %443
        %v446 = vmul.f32 %v426, %v439
        %v447 = vmul.f32 %v427, %v439
        %v448 = vmul.f32 %v428, %v439
        %v449 = vmul.f32 %v429, %v439
        %v450 = vmul.f32 %v430, %v444
        %v451 = vmul.f32 %v431, %v444
        %v452 = vmul.f32 %v432, %v444
        %v453 = vmul.f32 %v433, %v444
        %v454 = vadd.f32 %v446, %v450
        %v455 = vrot.slane %v454, 4
        %v456 = vadd.f32 %v454, %v455
        %v457 = vrot.slane %v456, 2
        %v458 = vadd.f32 %v456, %v457
        %v459 = vrot.slane %v458, 1
        %v460 = vadd.f32 %v458, %v459
        %v461 = vadd.f32 %v447, %v451
        %v462 = vrot.slane %v461, 4
        %v463 = vadd.f32 %v461, %v462
        %v464 = vrot.slane %v463, 2
        %v465 = vadd.f32 %v463, %v464
        %v466 = vrot.slane %v465, 1
        %v467 = vadd.f32 %v465, %v466
        %v468 = vadd.f32 %v448, %v452
        %v469 = vrot.slane %v468, 4
        %v470 = vadd.f32 %v468, %v469
        %v471 = vrot.slane %v470, 2
        %v472 = vadd.f32 %v470, %v471
        %v473 = vrot.slane %v472, 1
        %v474 = vadd.f32 %v472, %v473
        %v475 = vadd.f32 %v449, %v453
        %v476 = vrot.slane %v475, 4
        %v477 = vadd.f32 %v475, %v476
        %v478 = vrot.slane %v477, 2
        %v479 = vadd.f32 %v477, %v478
        %v480 = vrot.slane %v479, 1
        %v481 = vadd.f32 %v479, %v480
        %v482 = vld [vmem:[#allocation2] sm:$0x1]
        %484 = vset.pattern.permute.xlu0 0
        %485 = vperm.xlu0 %484, %v482
        %v486 = vpop.permute.xlu0 %485
        %v488 = vperm.slane %v486, 0
        %v489 = vadd.f32 %v460, %v488
        %v490 = vadd.f32 %v467, %v488
        %v491 = vadd.f32 %v474, %v488
        %v492 = vadd.f32 %v481, %v488
        %v497 = vrot.slane %v490, 7
        %v498 = vrot.slane %v491, 6
        %v499 = vrot.slane %v492, 5
        %vm500 = vcmask 1040384
        %v501 = vsel %vm500, %v489, %v497
        %vm502 = vcmask 1042434
        %v503 = vsel %vm502, %v498, %v499
        %vm504 = vcmask 1041408
        %v505 = vsel %vm504, %v501, %v503
        %v507 = vlaneseq
        %vm508 = vcmp.ge.s32.totalorder %v507, 0
        %vm509 = vcmp.lt.s32.totalorder %v507, 512
        %vm510 = vmand %vm508, %vm509
        %511 = vst.msk [vmem:[%s246] sm:$0xf] %vm510, %v505
        %s512 = sand.u32 %s142, 1
        %s513 = scalar_lea.sflag [#allocation5], %s512
        %s514 = sand.u32 %s142, 1
        %s515 = smul.addr %s514, 4
        %s516 = scalar_lea.vmem [#allocation6], %s515
        // Predicated region
        $region45: #{tpu_custom_call.1} parent=39 // pred_check
          %p517 = pneg %p152
        $region46: #{tpu_custom_call.1} parent=39 // pred_check_branch
          %519 = sbr.rel (%p517) target = $region48
        $region47: #{tpu_custom_call.1} parent=39 // pred_region
          %s520 = smul.u32 4, %s24
          %522 = vsyncadd %s513, 0
          %s523 = scalar_lea.hbm %s5, %s520
          %s525 = sshll.u32 %s516, 4
          %s526 = int_to_ptr.vmem [resolvable:$true] %s525
          %s527 = sshll.u32 %s523, 4
          %s528 = int_to_ptr.hbm [resolvable:$true] %s527
          %530 = dma.vmem_to_hbm [thread:$0]  %s526, 64, %s528, %s513
        $region48: #{tpu_custom_call.1} parent=39 // pred_fallthru
          _
      $region40: #{tpu_custom_call.1} parent=5 // pred_fallthru
        _
      %p531 = scmp.le.s32.totalorder 2, %s19
      // Predicated region
      $region49: #{tpu_custom_call.1} parent=5 // pred_check
        %p532 = pneg %p531
      $region50: #{tpu_custom_call.1} parent=5 // pred_check_branch
        %534 = sbr.rel (%p532) target = $region52
      $region51: #{tpu_custom_call.1} parent=5 // pred_region
        %s535 = ssub.s32 %s19, 2
        // Predicated region
        $region53: #{tpu_custom_call.1} parent=51 // pred_check
          %p536 = pneg %p158
        $region54: #{tpu_custom_call.1} parent=51 // pred_check_branch
          %538 = sbr.rel (%p536) target = $region56
        $region55: #{tpu_custom_call.1} parent=51 // pred_region
          %s539 = sand.u32 %s143, 1
          %s540 = scalar_lea.sflag [#allocation5], %s539
          %s541 = sand.u32 %s143, 1
          %s542 = smul.addr %s541, 4
          %s543 = scalar_lea.vmem [#allocation6], %s542
          %545 = dma.done %s540, 64
        $region56: #{tpu_custom_call.1} parent=51 // pred_fallthru
          _
      $region52: #{tpu_custom_call.1} parent=5 // pred_fallthru
        _
    $region6: #{tpu_custom_call.1} parent=1 // loop_footer
      %s23 = sadd.s32 1, %s19
    $region7: #{tpu_custom_call.1} parent=1 // loop_footer_branch
      %18 = sbr.rel target = $region3
    $region8: #{tpu_custom_call.1} parent=1 // loop_exit
      _
    %546 = vsyncpa [#allocation4], 1
    %s547 = scalar_lea.sflag [#allocation4], 1
    %548 = vsyncpa %s547, 1
    %549 = vsyncpa [#allocation5], 1
    %s550 = scalar_lea.sflag [#allocation5], 1
    %551 = vsyncpa %s550, 1

</llo_original>
